<compile_context>
chip_gen: v7x
topology: tpu7x:2x2x1
jax: 0.10.0
libtpu: 0.0.40
codegen_flags: <defaults>
</compile_context>

<pallas_src>
import functools

import numpy as np

import jax
import jax.numpy as jnp
from jax.experimental import pallas as pl
from jax.experimental.pallas import tpu as pltpu


def _round_up(x, m):
    return (x + m - 1) // m * m


def _vmem_capacity_bytes():
    """Per-TensorCore VMEM capacity; conservative default if unqueryable."""
    try:
        return int(pltpu.get_tpu_info().vmem_capacity_bytes)
    except Exception:
        return 64 << 20            # v7x per-TC VMEM (smallest current gen)


def _pick_tile(n, tm_max):
    """Largest multiple-of-8 divisor of n that is <= tm_max.  Prefers a tile
    that gives an even grid (>= 2 steps) so the single `parallel` token axis
    splits evenly across v7x's two TensorCores.  Returns None if n has no
    such divisor (caller falls back to padding)."""
    cands = [t for t in range(8, min(tm_max, n) + 1, 8) if n % t == 0]
    if not cands:
        return None
    even = [t for t in cands if (n // t) % 2 == 0]
    return max(even) if even else max(cands)


def _lora_qkv_kernel(x_ref, wqkv_ref, b_ref, wa_ref, wbq_ref, wbv_ref,
                     out_ref, *, dim, rank):
    """One (tm, C) token tile of
         qkv          = x @ Wqkv + b
         qkv[:, :C]  += (x @ Aq) @ Bq
         qkv[:, -C:] += (x @ Av) @ Bv
       computed segment-by-segment (q, k, v) so only one (tm, C) fp32 value is
       live at a time.  All matmuls are bf16 on the MXU with fp32 accumulation.
    """
    x = x_ref[...].astype(jnp.bfloat16)                        # per-tile cast

    # Merged rank-r LoRA "A" projection: x @ [Aq | Av] -> (tm, 2r); cast to
    # bf16 so the tiny LoRA "B" matmuls stay single-pass on the MXU.
    a = jnp.dot(x, wa_ref[...],
                preferred_element_type=jnp.float32).astype(jnp.bfloat16)

    # ---- q segment ----
    q = jnp.dot(x, wqkv_ref[:, :dim], preferred_element_type=jnp.float32)
    q += b_ref[:, :dim]
    q += jnp.dot(a[:, :rank], wbq_ref[...],
                 preferred_element_type=jnp.float32)
    out_ref[:, :dim] = q.astype(out_ref.dtype)

    # ---- k segment (no LoRA) ----
    k = jnp.dot(x, wqkv_ref[:, dim:2 * dim],
                preferred_element_type=jnp.float32)
    out_ref[:, dim:2 * dim] = (k + b_ref[:, dim:2 * dim]).astype(out_ref.dtype)

    # ---- v segment ----
    v = jnp.dot(x, wqkv_ref[:, 2 * dim:],
                preferred_element_type=jnp.float32)
    v += b_ref[:, 2 * dim:]
    v += jnp.dot(a[:, rank:], wbv_ref[...],
                 preferred_element_type=jnp.float32)
    out_ref[:, 2 * dim:] = v.astype(out_ref.dtype)


def lora_qkv(x_tokens, w_qkv_t, b_qkv, w_a_t, w_bq_t, w_bv_t, *,
             tm_max=512, out_dtype=jnp.bfloat16):
    """x_tokens: (N, C) in its native dtype (cast to bf16 in-kernel).
    Weights stored (in_features, out_features); Wqkv / A / B in bf16, bias in
    fp32.  Returns (N, 3C) in `out_dtype` (bf16 by default — what the
    downstream attention consumes)."""
    N, C = x_tokens.shape
    three_c = w_qkv_t.shape[1]
    two_r = w_a_t.shape[1]
    rank = two_r // 2

    # Token tile: prefer a divisor of N (SAM windows give N = B*64*64, so 512
    # always divides and no padding copy is made); pad only as a last resort.
    tm = _pick_tile(N, tm_max)
    if tm is None:
        tm = min(tm_max, _round_up(N, 8))
        n_pad = _round_up(N, tm)
        x_in = jnp.pad(x_tokens, ((0, n_pad - N), (0, 0)))
    else:
        n_pad = N
        x_in = x_tokens

    kernel = functools.partial(_lora_qkv_kernel, dim=C, rank=rank)

    weight_bytes = sum(int(a.size) * a.dtype.itemsize
                       for a in (w_qkv_t, b_qkv, w_a_t, w_bq_t, w_bv_t))
    vmem_cap = _vmem_capacity_bytes()
    out_itemsize = np.dtype(out_dtype).itemsize

    # Resident (single-buffered) weights when this jax exposes pl.Buffered.
    single_buffer_supported = hasattr(pl, "Buffered")

    def build(single_buffer_weights):
        # VMEM budget for THIS plan (no double-counting weights when they are
        # single-buffered), capped below the per-generation capacity.
        w_factor = 1 if single_buffer_weights else 2
        needed = (w_factor * weight_bytes
                  + 2 * tm * C * x_in.dtype.itemsize            # x tiles
                  + 2 * tm * three_c * out_itemsize             # out tiles
                  + 2 * tm * C * 4                              # live fp32 seg
                  + (4 << 20))                                  # headroom
        vmem_limit = int(min(max(needed, 32 << 20), vmem_cap - (8 << 20)))

        def w_spec(shape):
            zero_map = lambda i: (0,) * len(shape)
            if single_buffer_weights:
                # Constant index_map + single buffer: weights stay resident,
                # halving the dominant VMEM term (matters for ViT-L/H on v7x).
                return pl.BlockSpec(shape, zero_map,
                                    pipeline_mode=pl.Buffered(1))
            return pl.BlockSpec(shape, zero_map)

        grid_spec = pltpu.PrefetchScalarGridSpec(
            num_scalar_prefetch=0,
            grid=(n_pad // tm,),
            in_specs=[
                pl.BlockSpec((tm, C), lambda i: (i, 0)),   # x tile (native dt)
                w_spec((C, three_c)),                      # Wqkv^T   (bf16)
                w_spec((1, three_c)),                      # bias     (fp32)
                w_spec((C, two_r)),                        # [Aq|Av]^T (bf16)
                w_spec((rank, C)),                         # Bq^T     (bf16)
                w_spec((rank, C)),                         # Bv^T     (bf16)
            ],
            out_specs=pl.BlockSpec((tm, three_c), lambda i: (i, 0)),
        )
        return pl.pallas_call(
            kernel,
            out_shape=jax.ShapeDtypeStruct((n_pad, three_c), out_dtype),
            grid_spec=grid_spec,
            compiler_params=pltpu.CompilerParams(
                dimension_semantics=("parallel",),
                vmem_limit_bytes=vmem_limit),
        )

    args = (x_in, w_qkv_t, b_qkv, w_a_t, w_bq_t, w_bv_t)
    if single_buffer_supported:
        try:
            out = build(True)(*args)
        except Exception as e:
            # Narrow fallback: only if the failure is about the single-buffer
            # pipeline mode itself; anything else (real OOM / compile bug) is
            # re-raised instead of being silently masked.
            msg = str(e).lower()
            if not ("buffer" in msg or "pipeline" in msg):
                raise
            out = build(False)(*args)
    else:
        out = build(False)(*args)

    return out[:N] if n_pad != N else out


def lora_sam_qkv_forward(x_bhwc, params, *, tm_max=512, out_dtype=jnp.bfloat16):
    """Matches _LoRA_qkv.forward on x of shape (B, H, W, C)."""
    B, H, W, C = x_bhwc.shape
    x_tok = x_bhwc.reshape(B * H * W, C)
    out = lora_qkv(x_tok,
                   params["w_qkv_t"], params["b_qkv"],
                   params["w_a_t"], params["w_bq_t"], params["w_bv_t"],
                   tm_max=tm_max, out_dtype=out_dtype)
    return out.reshape(B, H, W, 3 * C)


def make_params(key, dim, r, *, init_b_nonzero=False):
    """Per LoRA.reset_parameters: A weights = 1, B weights = 0.  The base qkv
    linear gets deterministic pseudo-random weights.  init_b_nonzero swaps the
    zero B init for small random values so the LoRA add path is exercised."""
    k1, k2, k3, k4 = jax.random.split(key, 4)
    # PyTorch nn.Linear weight is (out, in); we store transposed (in, out).
    w_qkv = jax.random.normal(k1, (3 * dim, dim), jnp.float32) * 0.02
    b_qkv = jax.random.normal(k2, (3 * dim,), jnp.float32) * 0.01
    if init_b_nonzero:
        w_bq = jax.random.normal(k3, (r, dim), jnp.float32) * 0.02
        w_bv = jax.random.normal(k4, (r, dim), jnp.float32) * 0.02
    else:
        w_bq = jnp.zeros((r, dim), jnp.float32)
        w_bv = jnp.zeros((r, dim), jnp.float32)
    return {
        "w_qkv_t": jnp.transpose(w_qkv).astype(jnp.bfloat16),   # (C, 3C) bf16
        "b_qkv": b_qkv.reshape(1, 3 * dim),                     # (1, 3C) fp32
        "w_a_t": jnp.ones((dim, 2 * r), jnp.bfloat16),          # [Aq|Av]^T
        "w_bq_t": w_bq.astype(jnp.bfloat16),                    # (r, C) bf16
        "w_bv_t": w_bv.astype(jnp.bfloat16),                    # (r, C) bf16
    }


def reference_forward(x_bhwc, params):
    """Pure-JAX reference with the same dtype policy as the kernel (bf16
    inputs / bf16 rank-r activations, fp32 accumulation)."""
    B, H, W, C = x_bhwc.shape
    hi = jax.lax.Precision.HIGHEST
    x = x_bhwc.reshape(-1, C).astype(jnp.bfloat16).astype(jnp.float32)
    wqkv = params["w_qkv_t"].astype(jnp.float32)
    wa = params["w_a_t"].astype(jnp.float32)
    qkv = jnp.dot(x, wqkv, precision=hi) + params["b_qkv"].astype(jnp.float32)
    a = jnp.dot(x, wa, precision=hi)
    a = a.astype(jnp.bfloat16).astype(jnp.float32)
    r = wa.shape[1] // 2
    new_q = jnp.dot(a[:, :r], params["w_bq_t"].astype(jnp.float32), precision=hi)
    new_v = jnp.dot(a[:, r:], params["w_bv_t"].astype(jnp.float32), precision=hi)
    qkv = qkv.at[:, :C].add(new_q)
    qkv = qkv.at[:, -C:].add(new_v)
    return qkv.reshape(B, H, W, 3 * C)


if __name__ == "__main__":
    key = jax.random.PRNGKey(0)
    kx, kp = jax.random.split(key)

    # Small SAM-ViT-style block input (B, H, W, C).  C is a multiple of 128 so
    # the q/k/v column slices and output stores are lane-aligned.
    B, H, W, C = 2, 8, 8, 128
    r = 4

    x = jax.random.normal(kx, (B, H, W, C), jnp.float32)
    # nonzero B so the LoRA q/v adds are actually exercised by the check
    params = make_params(kp, C, r, init_b_nonzero=True)

    out = lora_sam_qkv_forward(x, params)
    out = jax.block_until_ready(out)

    ref = reference_forward(x, params)
    assert out.shape == (B, H, W, 3 * C)
    assert out.dtype == jnp.bfloat16
    err = float(jnp.max(jnp.abs(out.astype(jnp.float32) - ref)))
    # remaining delta is just the bf16 output quantization
    assert jnp.allclose(out.astype(jnp.float32), ref, atol=2e-2, rtol=2e-2), err

    print("KERNEL_OK")
</pallas_src>

<mosaic_0001>
module attributes {stable_mosaic.version = 11 : i64} {
  func.func @_lora_qkv_kernel(%arg0: i32, %arg1: memref<64x128xf32, #tpu.memory_space<vmem>>, %arg2: memref<128x384xbf16, #tpu.memory_space<vmem>>, %arg3: memref<1x384xf32, #tpu.memory_space<vmem>>, %arg4: memref<128x8xbf16, #tpu.memory_space<vmem>>, %arg5: memref<4x128xbf16, #tpu.memory_space<vmem>>, %arg6: memref<4x128xbf16, #tpu.memory_space<vmem>>, %arg7: memref<64x384xbf16, #tpu.memory_space<vmem>>) attributes {dimension_semantics = [#tpu.dimension_semantics<parallel>], iteration_bounds = array<i64: 2>, scalar_prefetch = 0 : i64, scratch_operands = 0 : i64, tpu.core_type = #tpu.core_type<tc>, window_params = [{transform_indices = @transform_0, window_bounds = array<i64: 64, 128>}, {pipeline_mode = #tpu.pipeline_mode<synchronous>, transform_indices = @transform_1, window_bounds = array<i64: 128, 384>}, {pipeline_mode = #tpu.pipeline_mode<synchronous>, transform_indices = @transform_2, window_bounds = array<i64: 1, 384>}, {pipeline_mode = #tpu.pipeline_mode<synchronous>, transform_indices = @transform_3, window_bounds = array<i64: 128, 8>}, {pipeline_mode = #tpu.pipeline_mode<synchronous>, transform_indices = @transform_4, window_bounds = array<i64: 4, 128>}, {pipeline_mode = #tpu.pipeline_mode<synchronous>, transform_indices = @transform_5, window_bounds = array<i64: 4, 128>}, {transform_indices = @transform_6, window_bounds = array<i64: 64, 384>}]} {
    %c0 = arith.constant 0 : index
    %c0_0 = arith.constant 0 : index
    %0 = vector.load %arg1[%c0, %c0_0] : memref<64x128xf32, #tpu.memory_space<vmem>>, vector<64x128xf32>
    %1 = arith.truncf %0 : vector<64x128xf32> to vector<64x128xbf16>
    %c0_1 = arith.constant 0 : index
    %c0_2 = arith.constant 0 : index
    %2 = vector.load %arg4[%c0_1, %c0_2] : memref<128x8xbf16, #tpu.memory_space<vmem>>, vector<128x8xbf16>
    %cst = arith.constant dense<0.000000e+00> : vector<64x8xf32>
    %3 = tpu.matmul %1, %2, %cst {dimension_numbers = #tpu.dot_dimension_numbers<[1], [0], [0], [1], [0, 0, 1, 1], [], []>} : vector<64x128xbf16>, vector<128x8xbf16>, vector<64x8xf32> -> vector<64x8xf32>
    %4 = arith.truncf %3 : vector<64x8xf32> to vector<64x8xbf16>
    %c0_3 = arith.constant 0 : index
    %c0_4 = arith.constant 0 : index
    %5 = vector.load %arg2[%c0_3, %c0_4] : memref<128x384xbf16, #tpu.memory_space<vmem>>, vector<128x128xbf16>
    %cst_5 = arith.constant dense<0.000000e+00> : vector<64x128xf32>
    %6 = tpu.matmul %1, %5, %cst_5 {dimension_numbers = #tpu.dot_dimension_numbers<[1], [0], [0], [1], [0, 0, 1, 1], [], []>} : vector<64x128xbf16>, vector<128x128xbf16>, vector<64x128xf32> -> vector<64x128xf32>
    %c0_6 = arith.constant 0 : index
    %c0_7 = arith.constant 0 : index
    %7 = vector.load %arg3[%c0_6, %c0_7] : memref<1x384xf32, #tpu.memory_space<vmem>>, vector<1x128xf32>
    %8 = vector.broadcast %7 : vector<1x128xf32> to vector<64x128xf32>
    %9 = arith.addf %6, %8 : vector<64x128xf32>
    %10 = vector.extract_strided_slice %4 {offsets = [0, 0], sizes = [64, 4], strides = [1, 1]} : vector<64x8xbf16> to vector<64x4xbf16>
    %c0_8 = arith.constant 0 : index
    %c0_9 = arith.constant 0 : index
    %11 = vector.load %arg5[%c0_8, %c0_9] : memref<4x128xbf16, #tpu.memory_space<vmem>>, vector<4x128xbf16>
    %cst_10 = arith.constant dense<0.000000e+00> : vector<64x128xf32>
    %12 = tpu.matmul %10, %11, %cst_10 {dimension_numbers = #tpu.dot_dimension_numbers<[1], [0], [0], [1], [0, 0, 1, 1], [], []>} : vector<64x4xbf16>, vector<4x128xbf16>, vector<64x128xf32> -> vector<64x128xf32>
    %13 = arith.addf %9, %12 : vector<64x128xf32>
    %14 = arith.truncf %13 : vector<64x128xf32> to vector<64x128xbf16>
    %c0_11 = arith.constant 0 : index
    %c0_12 = arith.constant 0 : index
    %15 = vector.load %arg7[%c0_11, %c0_12] : memref<64x384xbf16, #tpu.memory_space<vmem>>, vector<64x128xbf16>
    tpu.vector_store %arg7[%c0_11, %c0_12], %14 {strides = array<i32>} : memref<64x384xbf16, #tpu.memory_space<vmem>>, vector<64x128xbf16>,
    %c0_13 = arith.constant 0 : index
    %c128 = arith.constant 128 : index
    %16 = vector.load %arg2[%c0_13, %c128] : memref<128x384xbf16, #tpu.memory_space<vmem>>, vector<128x128xbf16>
    %cst_14 = arith.constant dense<0.000000e+00> : vector<64x128xf32>
    %17 = tpu.matmul %1, %16, %cst_14 {dimension_numbers = #tpu.dot_dimension_numbers<[1], [0], [0], [1], [0, 0, 1, 1], [], []>} : vector<64x128xbf16>, vector<128x128xbf16>, vector<64x128xf32> -> vector<64x128xf32>
    %c0_15 = arith.constant 0 : index
    %c128_16 = arith.constant 128 : index
    %18 = vector.load %arg3[%c0_15, %c128_16] : memref<1x384xf32, #tpu.memory_space<vmem>>, vector<1x128xf32>
    %19 = vector.broadcast %18 : vector<1x128xf32> to vector<64x128xf32>
    %20 = arith.addf %17, %19 : vector<64x128xf32>
    %21 = arith.truncf %20 : vector<64x128xf32> to vector<64x128xbf16>
    %c0_17 = arith.constant 0 : index
    %c128_18 = arith.constant 128 : index
    %22 = vector.load %arg7[%c0_17, %c128_18] : memref<64x384xbf16, #tpu.memory_space<vmem>>, vector<64x128xbf16>
    tpu.vector_store %arg7[%c0_17, %c128_18], %21 {strides = array<i32>} : memref<64x384xbf16, #tpu.memory_space<vmem>>, vector<64x128xbf16>,
    %c0_19 = arith.constant 0 : index
    %c256 = arith.constant 256 : index
    %23 = vector.load %arg2[%c0_19, %c256] : memref<128x384xbf16, #tpu.memory_space<vmem>>, vector<128x128xbf16>
    %cst_20 = arith.constant dense<0.000000e+00> : vector<64x128xf32>
    %24 = tpu.matmul %1, %23, %cst_20 {dimension_numbers = #tpu.dot_dimension_numbers<[1], [0], [0], [1], [0, 0, 1, 1], [], []>} : vector<64x128xbf16>, vector<128x128xbf16>, vector<64x128xf32> -> vector<64x128xf32>
    %c0_21 = arith.constant 0 : index
    %c256_22 = arith.constant 256 : index
    %25 = vector.load %arg3[%c0_21, %c256_22] : memref<1x384xf32, #tpu.memory_space<vmem>>, vector<1x128xf32>
    %26 = vector.broadcast %25 : vector<1x128xf32> to vector<64x128xf32>
    %27 = arith.addf %24, %26 : vector<64x128xf32>
    %28 = vector.extract_strided_slice %4 {offsets = [0, 4], sizes = [64, 4], strides = [1, 1]} : vector<64x8xbf16> to vector<64x4xbf16>
    %c0_23 = arith.constant 0 : index
    %c0_24 = arith.constant 0 : index
    %29 = vector.load %arg6[%c0_23, %c0_24] : memref<4x128xbf16, #tpu.memory_space<vmem>>, vector<4x128xbf16>
    %cst_25 = arith.constant dense<0.000000e+00> : vector<64x128xf32>
    %30 = tpu.matmul %28, %29, %cst_25 {dimension_numbers = #tpu.dot_dimension_numbers<[1], [0], [0], [1], [0, 0, 1, 1], [], []>} : vector<64x4xbf16>, vector<4x128xbf16>, vector<64x128xf32> -> vector<64x128xf32>
    %31 = arith.addf %27, %30 : vector<64x128xf32>
    %32 = arith.truncf %31 : vector<64x128xf32> to vector<64x128xbf16>
    %c0_26 = arith.constant 0 : index
    %c256_27 = arith.constant 256 : index
    %33 = vector.load %arg7[%c0_26, %c256_27] : memref<64x384xbf16, #tpu.memory_space<vmem>>, vector<64x128xbf16>
    tpu.vector_store %arg7[%c0_26, %c256_27], %32 {strides = array<i32>} : memref<64x384xbf16, #tpu.memory_space<vmem>>, vector<64x128xbf16>,
    return
  }
  func.func @transform_0(%arg0: i32) -> (i32, i32) {
    %c0_i32 = arith.constant 0 : i32
    %c0_i32_0 = arith.constant 0 : i32
    return %arg0, %c0_i32 : i32, i32
  }
  func.func @transform_1(%arg0: i32) -> (i32, i32) {
    %c0_i32 = arith.constant 0 : i32
    %c0_i32_0 = arith.constant 0 : i32
    %c0_i32_1 = arith.constant 0 : i32
    return %c0_i32, %c0_i32_0 : i32, i32
  }
  func.func @transform_2(%arg0: i32) -> (i32, i32) {
    %c0_i32 = arith.constant 0 : i32
    %c0_i32_0 = arith.constant 0 : i32
    %c0_i32_1 = arith.constant 0 : i32
    return %c0_i32, %c0_i32_0 : i32, i32
  }
  func.func @transform_3(%arg0: i32) -> (i32, i32) {
    %c0_i32 = arith.constant 0 : i32
    %c0_i32_0 = arith.constant 0 : i32
    %c0_i32_1 = arith.constant 0 : i32
    return %c0_i32, %c0_i32_0 : i32, i32
  }
  func.func @transform_4(%arg0: i32) -> (i32, i32) {
    %c0_i32 = arith.constant 0 : i32
    %c0_i32_0 = arith.constant 0 : i32
    %c0_i32_1 = arith.constant 0 : i32
    return %c0_i32, %c0_i32_0 : i32, i32
  }
  func.func @transform_5(%arg0: i32) -> (i32, i32) {
    %c0_i32 = arith.constant 0 : i32
    %c0_i32_0 = arith.constant 0 : i32
    %c0_i32_1 = arith.constant 0 : i32
    return %c0_i32, %c0_i32_0 : i32, i32
  }
  func.func @transform_6(%arg0: i32) -> (i32, i32) {
    %c0_i32 = arith.constant 0 : i32
    %c0_i32_0 = arith.constant 0 : i32
    return %arg0, %c0_i32 : i32, i32
  }
}

</mosaic_0001>

<llo_original>
// kernel: tpu_custom_call.1
$region0: #{tpu_custom_call.1}
  #allocation0 [shape = 'u32[]', space=smem, size = 0x4, offset = 0x4, fixed_abs, tag = 'smem constant byte address 0x4 - core index']
  #allocation1 [shape = 'u32[144,128]{1,0:T(1,128)}', space=vmem, size = 0x12000, scoped, tag = 'internal scratch']
  %s0 = inlined_call_operand.hbm [shape: f32[128,128], index: 0, kind: input, shape index: {}]
  %s1 = inlined_call_operand.hbm [shape: bf16[128,384], index: 1, kind: input, shape index: {}]
  %s2 = inlined_call_operand.vmem [shape: f32[1,384], index: 2, kind: input, shape index: {}]
  %s3 = inlined_call_operand.vmem [shape: bf16[128,8], index: 3, kind: input, shape index: {}]
  %s4 = inlined_call_operand.vmem [shape: bf16[4,128], index: 4, kind: input, shape index: {}]
  %s5 = inlined_call_operand.vmem [shape: bf16[4,128], index: 5, kind: input, shape index: {}]
  %s6 = inlined_call_operand.hbm [shape: bf16[128,384], index: 6, kind: output, shape index: {}]
  %s7 = sld [smem:[#allocation0]]
  $region65: #{tpu_custom_call.1} parent=0
    _
  %s9 = ssub.s32 1, %s7
  %s10 = scalar_select 0, %s9, %s7
  $region1: #{tpu_custom_call.1} parent=0
    #allocation2 [shape = 'u8[65536]{0}', space=vmem, size = 0x10000, scoped, tag = 'input window, operand 0']
    #allocation3 [shape = 's32[2]{0}', space=sflag, size = 0x8, scoped, tag = 'scoped memory for tpu_custom_call.1']
    #allocation4 [shape = 's32[2]{0}', space=sflag, size = 0x8, scoped, tag = 'scoped memory for tpu_custom_call.1']
    #allocation5 [shape = 'u8[98304]{0}', space=vmem, size = 0x18000, scoped, tag = 'input window, operand 1, single buffered']
    #allocation6 [shape = 's32[1]{0}', space=sflag, size = 0x4, scoped, tag = 'scoped memory for tpu_custom_call.1']
    #allocation7 [shape = 'u8[98304]{0}', space=vmem, size = 0x18000, scoped, tag = 'output window, operand 0']
    %11 = vsyncpa [#allocation3], 0
    %s12 = scalar_lea.sflag [#allocation3], 1
    %13 = vsyncpa %s12, 0
    %14 = vsyncpa [#allocation6], 0
    %15 = vsyncpa [#allocation4], 0
    %s16 = scalar_lea.sflag [#allocation4], 1
    %17 = vsyncpa %s16, 0
    loop: start=0, step=1, limit=4
    $region2: #{tpu_custom_call.1} parent=1 // loop_pre_header
      _
    $region3: #{tpu_custom_call.1} parent=1 // loop_header
      %s19 = sphi 0, %s23
      %p20 = scmp.ge.s32.totalorder %s19, 4
      %s29 = sphi 0, %s31
      %s32 = sphi 0, %s29
      %s33 = sphi 0, %s32
      %s49 = sphi 0, %s33
      %s53 = sphi 0, %s53
      %s55 = sphi 0, %s53
      %s56 = sphi 0, %s55
      %s70 = sphi 0, %s56
      %s74 = sphi 0, %s74
      %s76 = sphi 0, %s74
      %s77 = sphi 0, %s76
      %s91 = sphi 0, %s77
      %s95 = sphi 0, %s95
      %s97 = sphi 0, %s95
      %s98 = sphi 0, %s97
      %s112 = sphi 0, %s98
      %s116 = sphi 0, %s116
      %s118 = sphi 0, %s116
      %s119 = sphi 0, %s118
      %s133 = sphi 0, %s119
      %s137 = sphi 0, %s137
      %s139 = sphi 0, %s137
      %s140 = sphi 0, %s139
      %s154 = sphi 0, %s140
      %s160 = sphi 0, %s162
      %s163 = sphi 0, %s160
      %s164 = sphi 0, %s163
      %s180 = sphi 0, %s164
    $region4: #{tpu_custom_call.1} parent=1 // loop_header_branch
      %22 = sbr.rel (%p20) target = $region8
    $region5: #{tpu_custom_call.1} parent=1 // loop_body
      %s24 = ssub.s32 %s19, 1
      %s25 = ssub.s32 %s19, 2
      %s26 = sadd.s32 %s19, 1
      %s27 = ssub.s32 %s19, %s26
      %p28 = scmp.eq.s32.totalorder %s27, 0
      %s30 = sadd.s32 %s29, 1
      %s31 = scalar_select %p28, %s29, %s30
      %p34 = pneg %p28
      %p35 = scmp.eq.s32.totalorder %s19, 1
      %p36 = por %p34, %p35
      %p37 = scmp.ne.s32.totalorder %s29, %s32
      %p38 = scmp.eq.s32.totalorder %s19, 0
      %p39 = por %p37, %p38
      %p40 = scmp.ne.s32.totalorder %s29, %s32
      %p41 = scmp.eq.s32.totalorder %s24, 1
      %p42 = por %p40, %p41
      %p43 = scmp.ne.s32.totalorder %s32, %s33
      %p44 = scmp.eq.s32.totalorder %s24, 0
      %p45 = por %p43, %p44
      %p46 = scmp.ne.s32.totalorder %s32, %s33
      %p47 = scmp.eq.s32.totalorder %s25, 1
      %p48 = por %p46, %p47
      %p50 = scmp.ne.s32.totalorder %s33, %s49
      %p51 = scmp.eq.s32.totalorder %s25, 0
      %p52 = por %p50, %p51
      %s54 = sadd.s32 %s53, 1
      %p57 = scmp.eq.s32.totalorder %s19, 1
      %p58 = scmp.ne.s32.totalorder %s53, %s55
      %p59 = scmp.eq.s32.totalorder %s19, 0
      %p60 = por %p58, %p59
      %p61 = scmp.ne.s32.totalorder %s53, %s55
      %p62 = scmp.eq.s32.totalorder %s24, 1
      %p63 = por %p61, %p62
      %p64 = scmp.ne.s32.totalorder %s55, %s56
      %p65 = scmp.eq.s32.totalorder %s24, 0
      %p66 = por %p64, %p65
      %p67 = scmp.ne.s32.totalorder %s55, %s56
      %p68 = scmp.eq.s32.totalorder %s25, 1
      %p69 = por %p67, %p68
      %p71 = scmp.ne.s32.totalorder %s56, %s70
      %p72 = scmp.eq.s32.totalorder %s25, 0
      %p73 = por %p71, %p72
      %s75 = sadd.s32 %s74, 1
      %p78 = scmp.eq.s32.totalorder %s19, 1
      %p79 = scmp.ne.s32.totalorder %s74, %s76
      %p80 = scmp.eq.s32.totalorder %s19, 0
      %p81 = por %p79, %p80
      %p82 = scmp.ne.s32.totalorder %s74, %s76
      %p83 = scmp.eq.s32.totalorder %s24, 1
      %p84 = por %p82, %p83
      %p85 = scmp.ne.s32.totalorder %s76, %s77
      %p86 = scmp.eq.s32.totalorder %s24, 0
      %p87 = por %p85, %p86
      %p88 = scmp.ne.s32.totalorder %s76, %s77
      %p89 = scmp.eq.s32.totalorder %s25, 1
      %p90 = por %p88, %p89
      %p92 = scmp.ne.s32.totalorder %s77, %s91
      %p93 = scmp.eq.s32.totalorder %s25, 0
      %p94 = por %p92, %p93
      %s96 = sadd.s32 %s95, 1
      %p99 = scmp.eq.s32.totalorder %s19, 1
      %p100 = scmp.ne.s32.totalorder %s95, %s97
      %p101 = scmp.eq.s32.totalorder %s19, 0
      %p102 = por %p100, %p101
      %p103 = scmp.ne.s32.totalorder %s95, %s97
      %p104 = scmp.eq.s32.totalorder %s24, 1
      %p105 = por %p103, %p104
      %p106 = scmp.ne.s32.totalorder %s97, %s98
      %p107 = scmp.eq.s32.totalorder %s24, 0
      %p108 = por %p106, %p107
      %p109 = scmp.ne.s32.totalorder %s97, %s98
      %p110 = scmp.eq.s32.totalorder %s25, 1
      %p111 = por %p109, %p110
      %p113 = scmp.ne.s32.totalorder %s98, %s112
      %p114 = scmp.eq.s32.totalorder %s25, 0
      %p115 = por %p113, %p114
      %s117 = sadd.s32 %s116, 1
      %p120 = scmp.eq.s32.totalorder %s19, 1
      %p121 = scmp.ne.s32.totalorder %s116, %s118
      %p122 = scmp.eq.s32.totalorder %s19, 0
      %p123 = por %p121, %p122
      %p124 = scmp.ne.s32.totalorder %s116, %s118
      %p125 = scmp.eq.s32.totalorder %s24, 1
      %p126 = por %p124, %p125
      %p127 = scmp.ne.s32.totalorder %s118, %s119
      %p128 = scmp.eq.s32.totalorder %s24, 0
      %p129 = por %p127, %p128
      %p130 = scmp.ne.s32.totalorder %s118, %s119
      %p131 = scmp.eq.s32.totalorder %s25, 1
      %p132 = por %p130, %p131
      %p134 = scmp.ne.s32.totalorder %s119, %s133
      %p135 = scmp.eq.s32.totalorder %s25, 0
      %p136 = por %p134, %p135
      %s138 = sadd.s32 %s137, 1
      %p141 = scmp.eq.s32.totalorder %s19, 1
      %p142 = scmp.ne.s32.totalorder %s137, %s139
      %p143 = scmp.eq.s32.totalorder %s19, 0
      %p144 = por %p142, %p143
      %p145 = scmp.ne.s32.totalorder %s137, %s139
      %p146 = scmp.eq.s32.totalorder %s24, 1
      %p147 = por %p145, %p146
      %p148 = scmp.ne.s32.totalorder %s139, %s140
      %p149 = scmp.eq.s32.totalorder %s24, 0
      %p150 = por %p148, %p149
      %p151 = scmp.ne.s32.totalorder %s139, %s140
      %p152 = scmp.eq.s32.totalorder %s25, 1
      %p153 = por %p151, %p152
      %p155 = scmp.ne.s32.totalorder %s140, %s154
      %p156 = scmp.eq.s32.totalorder %s25, 0
      %p157 = por %p155, %p156
      %s158 = ssub.s32 %s19, %s26
      %p159 = scmp.eq.s32.totalorder %s158, 0
      %s161 = sadd.s32 %s160, 1
      %s162 = scalar_select %p159, %s160, %s161
      %p165 = pneg %p159
      %p166 = scmp.eq.s32.totalorder %s19, 1
      %p167 = por %p165, %p166
      %p168 = scmp.ne.s32.totalorder %s160, %s163
      %p169 = scmp.eq.s32.totalorder %s19, 0
      %p170 = por %p168, %p169
      %p171 = scmp.ne.s32.totalorder %s160, %s163
      %p172 = scmp.eq.s32.totalorder %s24, 1
      %p173 = por %p171, %p172
      %p174 = scmp.ne.s32.totalorder %s163, %s164
      %p175 = scmp.eq.s32.totalorder %s24, 0
      %p176 = por %p174, %p175
      %p177 = scmp.ne.s32.totalorder %s163, %s164
      %p178 = scmp.eq.s32.totalorder %s25, 1
      %p179 = por %p177, %p178
      %p181 = scmp.ne.s32.totalorder %s164, %s180
      %p182 = scmp.eq.s32.totalorder %s25, 0
      %p183 = por %p181, %p182
      %p184 = scmp.le.s32.totalorder 1, %s19
      %p185 = scmp.lt.s32.totalorder %s19, 3
      %p186 = pnand %p184, %p185
      %p187 = pneg %p186
      // Predicated region
      $region9: #{tpu_custom_call.1} parent=5 // pred_check
        _
      $region10: #{tpu_custom_call.1} parent=5 // pred_check_branch
        %189 = sbr.rel (%p186) target = $region12
      $region11: #{tpu_custom_call.1} parent=5 // pred_region
        %s190 = ssub.s32 %s19, 1
        // Predicated region
        $region13: #{tpu_custom_call.1} parent=11 // pred_check
          %p191 = pneg %p66
        $region14: #{tpu_custom_call.1} parent=11 // pred_check_branch
          %193 = sbr.rel (%p191) target = $region16
        $region15: #{tpu_custom_call.1} parent=11 // pred_region
          %s195 = ssub.s32 3072, 3072
          %196 = vsyncadd [#allocation6], %s195
          %s197 = sshll.u32 [#allocation5], 4
          %s198 = int_to_ptr.vmem [resolvable:$true] %s197
          %203 = dma.hbm_to_vmem [thread:$0]  %s1, 3072, %s198, [#allocation6], 192, 192, 12
        $region16: #{tpu_custom_call.1} parent=11 // pred_fallthru
          _
        // Predicated region
        $region17: #{tpu_custom_call.1} parent=11 // pred_check
          %p204 = pneg %p87
        $region18: #{tpu_custom_call.1} parent=11 // pred_check_branch
          %206 = sbr.rel (%p204) target = $region20
        $region19: #{tpu_custom_call.1} parent=11 // pred_region
          _
        $region20: #{tpu_custom_call.1} parent=11 // pred_fallthru
          _
        // Predicated region
        $region21: #{tpu_custom_call.1} parent=11 // pred_check
          %p207 = pneg %p108
        $region22: #{tpu_custom_call.1} parent=11 // pred_check_branch
          %209 = sbr.rel (%p207) target = $region24
        $region23: #{tpu_custom_call.1} parent=11 // pred_region
          _
        $region24: #{tpu_custom_call.1} parent=11 // pred_fallthru
          _
        // Predicated region
        $region25: #{tpu_custom_call.1} parent=11 // pred_check
          %p210 = pneg %p129
        $region26: #{tpu_custom_call.1} parent=11 // pred_check_branch
          %212 = sbr.rel (%p210) target = $region28
        $region27: #{tpu_custom_call.1} parent=11 // pred_region
          _
        $region28: #{tpu_custom_call.1} parent=11 // pred_fallthru
          _
        // Predicated region
        $region29: #{tpu_custom_call.1} parent=11 // pred_check
          %p213 = pneg %p150
        $region30: #{tpu_custom_call.1} parent=11 // pred_check_branch
          %215 = sbr.rel (%p213) target = $region32
        $region31: #{tpu_custom_call.1} parent=11 // pred_region
          _
        $region32: #{tpu_custom_call.1} parent=11 // pred_fallthru
          _
      $region12: #{tpu_custom_call.1} parent=5 // pred_fallthru
        _
      %p216 = scmp.lt.s32.totalorder %s19, 2
      // Predicated region
      $region33: #{tpu_custom_call.1} parent=5 // pred_check
        %p217 = pneg %p216
      $region34: #{tpu_custom_call.1} parent=5 // pred_check_branch
        %219 = sbr.rel (%p217) target = $region36
      $region35: #{tpu_custom_call.1} parent=5 // pred_region
        // Predicated region
        $region37: #{tpu_custom_call.1} parent=35 // pred_check
          %p220 = pneg %p39
        $region38: #{tpu_custom_call.1} parent=35 // pred_check_branch
          %222 = sbr.rel (%p220) target = $region40
        $region39: #{tpu_custom_call.1} parent=35 // pred_region
          %s223 = sand.u32 %s29, 1
          %s224 = scalar_lea.sflag [#allocation3], %s223
          %s225 = sand.u32 %s29, 1
          %s226 = smul.addr %s225, 64
          %s227 = scalar_lea.vmem [#allocation2], %s226
          %s228 = smul.u32 8, %s19
          %s230 = ssub.s32 1024, 1024
          %231 = vsyncadd %s224, %s230
          %s232 = smul.addr %s228, 128
          %s233 = scalar_lea.hbm %s0, %s232
          %s234 = sshll.u32 %s227, 4
          %s235 = int_to_ptr.vmem [resolvable:$true] %s234
          %240 = dma.hbm_to_vmem [thread:$0]  %s233, 1024, %s235, %s224, 128, 128, 8
        $region40: #{tpu_custom_call.1} parent=35 // pred_fallthru
          _
      $region36: #{tpu_custom_call.1} parent=5 // pred_fallthru
        _
      %p241 = scmp.le.s32.totalorder 1, %s19
      %p242 = scmp.lt.s32.totalorder %s19, 3
      %p243 = pnand %p241, %p242
      %p244 = pneg %p243
      // Predicated region
      $region41: #{tpu_custom_call.1} parent=5 // pred_check
        _
      $region42: #{tpu_custom_call.1} parent=5 // pred_check_branch
        %246 = sbr.rel (%p243) target = $region44
      $region43: #{tpu_custom_call.1} parent=5 // pred_region
        %s247 = ssub.s32 %s19, 1
        %s248 = sand.u32 %s32, 1
        %s249 = scalar_lea.sflag [#allocation3], %s248
        %s250 = sand.u32 %s32, 1
        %s251 = smul.addr %s250, 64
        %s252 = scalar_lea.vmem [#allocation2], %s251
        // Predicated region
        $region45: #{tpu_custom_call.1} parent=43 // pred_check
          %p253 = pneg %p45
        $region46: #{tpu_custom_call.1} parent=43 // pred_check_branch
          %255 = sbr.rel (%p253) target = $region48
        $region47: #{tpu_custom_call.1} parent=43 // pred_region
          %256 = dma.done %s249, 1024
        $region48: #{tpu_custom_call.1} parent=43 // pred_fallthru
          _
        // Predicated region
        $region49: #{tpu_custom_call.1} parent=43 // pred_check
          %p257 = pneg %p66
        $region50: #{tpu_custom_call.1} parent=43 // pred_check_branch
          %259 = sbr.rel (%p257) target = $region52
        $region51: #{tpu_custom_call.1} parent=43 // pred_region
          %260 = dma.done [#allocation6], 3072
        $region52: #{tpu_custom_call.1} parent=43 // pred_fallthru
          _
        %s261 = sand.u32 %s32, 1
        %s262 = scalar_lea.sflag [#allocation3], %s261
        %s263 = sand.u32 %s32, 1
        %s264 = smul.addr %s263, 64
        %s265 = scalar_lea.vmem [#allocation2], %s264
        %p266 = pneg %p45
        %p267 = pneg %p42
        %p268 = pneg %p66
        %p269 = pneg %p63
        %p270 = pneg %p87
        %p271 = pneg %p84
        %p272 = pneg %p108
        %p273 = pneg %p105
        %p274 = pneg %p129
        %p275 = pneg %p126
        %p276 = pneg %p150
        %p277 = pneg %p147
        %p278 = pneg %p176
        %p279 = pneg %p173
        %s280 = sand.u32 %s163, 1
        %s281 = scalar_lea.sflag [#allocation4], %s280
        %s282 = sand.u32 %s163, 1
        %s283 = smul.addr %s282, 96
        %s284 = scalar_lea.vmem [#allocation7], %s283
        %s285 = smul.u32 8, %s24
        %s286 = smul.u32 8, %s24
        %v288 = vld [vmem:[%s252] sm:$0xff]
        %v289 = vld [vmem:[%s252 + $0x8] sm:$0xff]
        %v290 = vld [vmem:[%s252 + $0x10] sm:$0xff]
        %v291 = vld [vmem:[%s252 + $0x18] sm:$0xff]
        %v292 = vld [vmem:[%s252 + $0x20] sm:$0xff]
        %v293 = vld [vmem:[%s252 + $0x28] sm:$0xff]
        %v294 = vld [vmem:[%s252 + $0x30] sm:$0xff]
        %v295 = vld [vmem:[%s252 + $0x38] sm:$0xff]
        %v296 = vpack.c.bf16 %v289, %v288
        %v297 = vpack.c.bf16 %v291, %v290
        %v298 = vpack.c.bf16 %v293, %v292
        %v299 = vpack.c.bf16 %v295, %v294
        %v300 = vld [vmem:[%s3] sm:$0xf]
        %v301 = vld [vmem:[%s3 + $0x4] sm:$0xf]
        %v302 = vld [vmem:[%s3 + $0x8] sm:$0xf]
        %v303 = vld [vmem:[%s3 + $0xc] sm:$0xf]
        %v304 = vld [vmem:[%s3 + $0x10] sm:$0xf]
        %v305 = vld [vmem:[%s3 + $0x14] sm:$0xf]
        %v306 = vld [vmem:[%s3 + $0x18] sm:$0xf]
        %v307 = vld [vmem:[%s3 + $0x1c] sm:$0xf]
        %v308 = vld [vmem:[%s3 + $0x20] sm:$0xf]
        %v309 = vld [vmem:[%s3 + $0x24] sm:$0xf]
        %v310 = vld [vmem:[%s3 + $0x28] sm:$0xf]
        %v311 = vld [vmem:[%s3 + $0x2c] sm:$0xf]
        %v312 = vld [vmem:[%s3 + $0x30] sm:$0xf]
        %v313 = vld [vmem:[%s3 + $0x34] sm:$0xf]
        %v314 = vld [vmem:[%s3 + $0x38] sm:$0xf]
        %v315 = vld [vmem:[%s3 + $0x3c] sm:$0xf]
        %v332 = vunpack.c.l.b16 %v300
        %v333 = vunpack.c.l.b16 %v301
        %v334 = vunpack.c.l.b16 %v302
        %v335 = vunpack.c.l.b16 %v303
        %v336 = vunpack.c.l.b16 %v304
        %v337 = vunpack.c.l.b16 %v305
        %v338 = vunpack.c.l.b16 %v306
        %v339 = vunpack.c.l.b16 %v307
        %v340 = vunpack.c.l.b16 %v308
        %v341 = vunpack.c.l.b16 %v309
        %v342 = vunpack.c.l.b16 %v310
        %v343 = vunpack.c.l.b16 %v311
        %v344 = vunpack.c.l.b16 %v312
        %v345 = vunpack.c.l.b16 %v313
        %v346 = vunpack.c.l.b16 %v314
        %v347 = vunpack.c.l.b16 %v315
        %v348 = vpack.c.b16 %v333, %v332
        %v349 = vpack.c.b16 %v335, %v334
        %v350 = vpack.c.b16 %v337, %v336
        %v351 = vpack.c.b16 %v339, %v338
        %v352 = vpack.c.b16 %v341, %v340
        %v353 = vpack.c.b16 %v343, %v342
        %v354 = vpack.c.b16 %v345, %v344
        %v355 = vpack.c.b16 %v347, %v346
        %364 = vmatprep.subr.bf16.mxu0 0
        %365 = vmatpush1.bf16.msra.mxu0 %v348
        %366 = vmatprep.subr.bf16.mxu0 0
        %367 = vmatpush1.bf16.msra.mxu0 %v349
        %368 = vmatprep.subr.bf16.mxu0 0
        %369 = vmatpush1.bf16.msra.mxu0 %v350
        %370 = vmatprep.subr.bf16.mxu0 0
        %371 = vmatpush1.bf16.msra.mxu0 %v351
        %372 = vmatprep.subr.bf16.mxu0 0
        %373 = vmatpush1.bf16.msra.mxu0 %v352
        %374 = vmatprep.subr.bf16.mxu0 0
        %375 = vmatpush1.bf16.msra.mxu0 %v353
        %376 = vmatprep.subr.bf16.mxu0 0
        %377 = vmatpush1.bf16.msra.mxu0 %v354
        %378 = vmatprep.subr.bf16.mxu0 0
        %379 = vmatpush1.bf16.msra.mxu0 %v355
        %380 = vmatprep.subr.bf16.mxu0 0
        %381 = vmatpush1.bf16.msra.mxu0 0
        %382 = vmatprep.subr.bf16.mxu0 0
        %383 = vmatpush1.bf16.msra.mxu0 0
        %384 = vmatprep.subr.bf16.mxu0 0
        %385 = vmatpush1.bf16.msra.mxu0 0
        %386 = vmatprep.subr.bf16.mxu0 0
        %387 = vmatpush1.bf16.msra.mxu0 0
        %388 = vmatprep.subr.bf16.mxu0 0
        %389 = vmatpush1.bf16.msra.mxu0 0
        %390 = vmatprep.subr.bf16.mxu0 0
        %391 = vmatpush1.bf16.msra.mxu0 0
        %392 = vmatprep.subr.bf16.mxu0 0
        %393 = vmatpush1.bf16.msra.mxu0 0
        %394 = vmatprep.subr.bf16.mxu0 0
        %395 = vmatpush1.bf16.msra.mxu0 0
        %396 = vmatprep.mubr.bf16.mxu0 0
        %397 = vmatmul.mubr.bf16.gmra.mrb[0].mxu0 %v296
        %v398 = vpop.f32.mrb[0].mxu0
        %v399 = vadd.f32 0.0, %v398
        %v400 = vpop.f32.mrb[0].mxu0
        %v401 = vpop.f32.mrb[0].mxu0
        %v402 = vadd.f32 0.0, %v401
        %v403 = vpop.f32.mrb[0].mxu0
        %404 = vmatprep.mubr.bf16.mxu0 0
        %405 = vmatmul.mubr.bf16.gmra.mrb[0].mxu0 %v297
        %v406 = vpop.f32.mrb[0].mxu0
        %v407 = vadd.f32 0.0, %v406
        %v408 = vpop.f32.mrb[0].mxu0
        %v409 = vpop.f32.mrb[0].mxu0
        %v410 = vadd.f32 0.0, %v409
        %v411 = vpop.f32.mrb[0].mxu0
        %412 = vmatprep.mubr.bf16.mxu0 0
        %413 = vmatmul.mubr.bf16.gmra.mrb[0].mxu0 %v298
        %v414 = vpop.f32.mrb[0].mxu0
        %v415 = vadd.f32 0.0, %v414
        %v416 = vpop.f32.mrb[0].mxu0
        %v417 = vpop.f32.mrb[0].mxu0
        %v418 = vadd.f32 0.0, %v417
        %v419 = vpop.f32.mrb[0].mxu0
        %420 = vmatprep.mubr.bf16.mxu0 0
        %421 = vmatmul.mubr.bf16.gmra.mrb[0].mxu0 %v299
        %v422 = vpop.f32.mrb[0].mxu0
        %v423 = vadd.f32 0.0, %v422
        %v424 = vpop.f32.mrb[0].mxu0
        %v425 = vpop.f32.mrb[0].mxu0
        %v426 = vadd.f32 0.0, %v425
        %v427 = vpop.f32.mrb[0].mxu0
        %428 = vdwg.mxu0
        %v429 = vpack.c.bf16 %v402, %v399
        %v430 = vpack.c.bf16 %v410, %v407
        %v431 = vpack.c.bf16 %v418, %v415
        %v432 = vpack.c.bf16 %v426, %v423
        %v433 = vld [vmem:[#allocation5] sm:$0xf]
        %v434 = vld [vmem:[#allocation5 + $0xc] sm:$0xf]
        %v435 = vld [vmem:[#allocation5 + $0x18] sm:$0xf]
        %v436 = vld [vmem:[#allocation5 + $0x24] sm:$0xf]
        %v437 = vld [vmem:[#allocation5 + $0x30] sm:$0xf]
        %v438 = vld [vmem:[#allocation5 + $0x3c] sm:$0xf]
        %v439 = vld [vmem:[#allocation5 + $0x48] sm:$0xf]
        %v440 = vld [vmem:[#allocation5 + $0x54] sm:$0xf]
        %v441 = vld [vmem:[#allocation5 + $0x60] sm:$0xf]
        %v442 = vld [vmem:[#allocation5 + $0x6c] sm:$0xf]
        %v443 = vld [vmem:[#allocation5 + $0x78] sm:$0xf]
        %v444 = vld [vmem:[#allocation5 + $0x84] sm:$0xf]
        %v445 = vld [vmem:[#allocation5 + $0x90] sm:$0xf]
        %v446 = vld [vmem:[#allocation5 + $0x9c] sm:$0xf]
        %v447 = vld [vmem:[#allocation5 + $0xa8] sm:$0xf]
        %v448 = vld [vmem:[#allocation5 + $0xb4] sm:$0xf]
        %v449 = vld [vmem:[%s2] sm:$0x1]
        %v451 = vlaneseq
        %v452 = vshrl.u32 %v451, 7
        %v453 = vsub.s32 0, %v452
        %v454 = vrot.slane %v449, %v453
        %v472 = vunpack.c.l.b16 %v433
        %v473 = vunpack.c.l.b16 %v434
        %v474 = vunpack.c.l.b16 %v435
        %v475 = vunpack.c.l.b16 %v436
        %v476 = vunpack.c.l.b16 %v437
        %v477 = vunpack.c.l.b16 %v438
        %v478 = vunpack.c.l.b16 %v439
        %v479 = vunpack.c.l.b16 %v440
        %v480 = vunpack.c.l.b16 %v441
        %v481 = vunpack.c.l.b16 %v442
        %v482 = vunpack.c.l.b16 %v443
        %v483 = vunpack.c.l.b16 %v444
        %v484 = vunpack.c.l.b16 %v445
        %v485 = vunpack.c.l.b16 %v446
        %v486 = vunpack.c.l.b16 %v447
        %v487 = vunpack.c.l.b16 %v448
        %v488 = vpack.c.b16 %v473, %v472
        %v489 = vpack.c.b16 %v475, %v474
        %v490 = vpack.c.b16 %v477, %v476
        %v491 = vpack.c.b16 %v479, %v478
        %v492 = vpack.c.b16 %v481, %v480
        %v493 = vpack.c.b16 %v483, %v482
        %v494 = vpack.c.b16 %v485, %v484
        %v495 = vpack.c.b16 %v487, %v486
        %504 = vmatprep.subr.bf16.mxu0 0
        %505 = vmatpush1.bf16.msra.mxu0 %v488
        %506 = vmatprep.subr.bf16.mxu0 0
        %507 = vmatpush1.bf16.msra.mxu0 %v489
        %508 = vmatprep.subr.bf16.mxu0 0
        %509 = vmatpush1.bf16.msra.mxu0 %v490
        %510 = vmatprep.subr.bf16.mxu0 0
        %511 = vmatpush1.bf16.msra.mxu0 %v491
        %512 = vmatprep.subr.bf16.mxu0 0
        %513 = vmatpush1.bf16.msra.mxu0 %v492
        %514 = vmatprep.subr.bf16.mxu0 0
        %515 = vmatpush1.bf16.msra.mxu0 %v493
        %516 = vmatprep.subr.bf16.mxu0 0
        %517 = vmatpush1.bf16.msra.mxu0 %v494
        %518 = vmatprep.subr.bf16.mxu0 0
        %519 = vmatpush1.bf16.msra.mxu0 %v495
        %520 = vmatprep.subr.bf16.mxu0 0
        %521 = vmatpush1.bf16.msra.mxu0 0
        %522 = vmatprep.subr.bf16.mxu0 0
        %523 = vmatpush1.bf16.msra.mxu0 0
        %524 = vmatprep.subr.bf16.mxu0 0
        %525 = vmatpush1.bf16.msra.mxu0 0
        %526 = vmatprep.subr.bf16.mxu0 0
        %527 = vmatpush1.bf16.msra.mxu0 0
        %528 = vmatprep.subr.bf16.mxu0 0
        %529 = vmatpush1.bf16.msra.mxu0 0
        %530 = vmatprep.subr.bf16.mxu0 0
        %531 = vmatpush1.bf16.msra.mxu0 0
        %532 = vmatprep.subr.bf16.mxu0 0
        %533 = vmatpush1.bf16.msra.mxu0 0
        %534 = vmatprep.subr.bf16.mxu0 0
        %535 = vmatpush1.bf16.msra.mxu0 0
        %536 = vmatprep.mubr.bf16.mxu0 0
        %537 = vmatmul.mubr.bf16.gmra.mrb[0].mxu0 %v296
        %v538 = vpop.f32.mrb[0].mxu0
        %v539 = vadd.f32 %v454, %v538
        %v540 = vpop.f32.mrb[0].mxu0
        %v541 = vpop.f32.mrb[0].mxu0
        %v542 = vadd.f32 %v454, %v541
        %v543 = vpop.f32.mrb[0].mxu0
        %544 = vmatprep.mubr.bf16.mxu0 0
        %545 = vmatmul.mubr.bf16.gmra.mrb[0].mxu0 %v297
        %v546 = vpop.f32.mrb[0].mxu0
        %v547 = vadd.f32 %v454, %v546
        %v548 = vpop.f32.mrb[0].mxu0
        %v549 = vpop.f32.mrb[0].mxu0
        %v550 = vadd.f32 %v454, %v549
        %v551 = vpop.f32.mrb[0].mxu0
        %552 = vmatprep.mubr.bf16.mxu0 0
        %553 = vmatmul.mubr.bf16.gmra.mrb[0].mxu0 %v298
        %v554 = vpop.f32.mrb[0].mxu0
        %v555 = vadd.f32 %v454, %v554
        %v556 = vpop.f32.mrb[0].mxu0
        %v557 = vpop.f32.mrb[0].mxu0
        %v558 = vadd.f32 %v454, %v557
        %v559 = vpop.f32.mrb[0].mxu0
        %560 = vmatprep.mubr.bf16.mxu0 0
        %561 = vmatmul.mubr.bf16.gmra.mrb[0].mxu0 %v299
        %v562 = vpop.f32.mrb[0].mxu0
        %v563 = vadd.f32 %v454, %v562
        %v564 = vpop.f32.mrb[0].mxu0
        %v565 = vpop.f32.mrb[0].mxu0
        %v566 = vadd.f32 %v454, %v565
        %v567 = vpop.f32.mrb[0].mxu0
        %568 = vdwg.mxu0
        %v569 = vld [vmem:[%s4] sm:$0x3]
        %vm570 = vcmask 31744
        %v572 = vsel %vm570, %v429, 0
        %v575 = vsel %vm570, %v430, 0
        %v578 = vsel %vm570, %v431, 0
        %v581 = vsel %vm570, %v432, 0
        %vm583 = vcmask 1041408
        %v585 = vsel %vm583, %v569, 0
        %587 = vmatprep.subr.bf16.mxu0 0
        %588 = vmatpush1.bf16.msra.mxu0 %v585
        %589 = vmatprep.subr.bf16.mxu0 0
        %590 = vmatpush1.bf16.msra.mxu0 0
        %591 = vmatprep.subr.bf16.mxu0 0
        %592 = vmatpush1.bf16.msra.mxu0 0
        %593 = vmatprep.subr.bf16.mxu0 0
        %594 = vmatpush1.bf16.msra.mxu0 0
        %595 = vmatprep.subr.bf16.mxu0 0
        %596 = vmatpush1.bf16.msra.mxu0 0
        %597 = vmatprep.subr.bf16.mxu0 0
        %598 = vmatpush1.bf16.msra.mxu0 0
        %599 = vmatprep.subr.bf16.mxu0 0
        %600 = vmatpush1.bf16.msra.mxu0 0
        %601 = vmatprep.subr.bf16.mxu0 0
        %602 = vmatpush1.bf16.msra.mxu0 0
        %603 = vmatprep.subr.bf16.mxu0 0
        %604 = vmatpush1.bf16.msra.mxu0 0
        %605 = vmatprep.subr.bf16.mxu0 0
        %606 = vmatpush1.bf16.msra.mxu0 0
        %607 = vmatprep.subr.bf16.mxu0 0
        %608 = vmatpush1.bf16.msra.mxu0 0
        %609 = vmatprep.subr.bf16.mxu0 0
        %610 = vmatpush1.bf16.msra.mxu0 0
        %611 = vmatprep.subr.bf16.mxu0 0
        %612 = vmatpush1.bf16.msra.mxu0 0
        %613 = vmatprep.subr.bf16.mxu0 0
        %614 = vmatpush1.bf16.msra.mxu0 0
        %615 = vmatprep.subr.bf16.mxu0 0
        %616 = vmatpush1.bf16.msra.mxu0 0
        %617 = vmatprep.subr.bf16.mxu0 0
        %618 = vmatpush1.bf16.msra.mxu0 0
        %619 = vmatprep.mubr.bf16.mxu0 0
        %620 = vmatmul.mubr.bf16.gmra.mrb[0].mxu0 %v572
        %v621 = vpop.f32.mrb[0].mxu0
        %v622 = vadd.f32 0.0, %v621
        %v623 = vpop.f32.mrb[0].mxu0
        %v624 = vpop.f32.mrb[0].mxu0
        %v625 = vadd.f32 0.0, %v624
        %v626 = vpop.f32.mrb[0].mxu0
        %627 = vmatprep.mubr.bf16.mxu0 0
        %628 = vmatmul.mubr.bf16.gmra.mrb[0].mxu0 %v575
        %v629 = vpop.f32.mrb[0].mxu0
        %v630 = vadd.f32 0.0, %v629
        %v631 = vpop.f32.mrb[0].mxu0
        %v632 = vpop.f32.mrb[0].mxu0
        %v633 = vadd.f32 0.0, %v632
        %v634 = vpop.f32.mrb[0].mxu0
        %635 = vmatprep.mubr.bf16.mxu0 0
        %636 = vmatmul.mubr.bf16.gmra.mrb[0].mxu0 %v578
        %v637 = vpop.f32.mrb[0].mxu0
        %v638 = vadd.f32 0.0, %v637
        %v639 = vpop.f32.mrb[0].mxu0
        %v640 = vpop.f32.mrb[0].mxu0
        %v641 = vadd.f32 0.0, %v640
        %v642 = vpop.f32.mrb[0].mxu0
        %643 = vmatprep.mubr.bf16.mxu0 0
        %644 = vmatmul.mubr.bf16.gmra.mrb[0].mxu0 %v581
        %v645 = vpop.f32.mrb[0].mxu0
        %v646 = vadd.f32 0.0, %v645
        %v647 = vpop.f32.mrb[0].mxu0
        %v648 = vpop.f32.mrb[0].mxu0
        %v649 = vadd.f32 0.0, %v648
        %v650 = vpop.f32.mrb[0].mxu0
        %651 = vdwg.mxu0
        %v652 = vadd.f32 %v539, %v622
        %v653 = vadd.f32 %v542, %v625
        %v654 = vadd.f32 %v547, %v630
        %v655 = vadd.f32 %v550, %v633
        %v656 = vadd.f32 %v555, %v638
        %v657 = vadd.f32 %v558, %v641
        %v658 = vadd.f32 %v563, %v646
        %v659 = vadd.f32 %v566, %v649
        %v660 = vpack.c.bf16 %v653, %v652
        %v661 = vpack.c.bf16 %v655, %v654
        %v662 = vpack.c.bf16 %v657, %v656
        %v663 = vpack.c.bf16 %v659, %v658
        %v668 = vunpack.c.l.b16 %v660
        %v669 = vunpack.c.h.b16 %v660
        %v670 = vunpack.c.l.b16 %v661
        %v671 = vunpack.c.h.b16 %v661
        %v672 = vunpack.c.l.b16 %v662
        %v673 = vunpack.c.h.b16 %v662
        %v674 = vunpack.c.l.b16 %v663
        %v675 = vunpack.c.h.b16 %v663
        %v676 = vpack.c.b16 %v668, %v668
        %v677 = vpack.c.b16 %v669, %v669
        %v678 = vpack.c.b16 %v670, %v670
        %v679 = vpack.c.b16 %v671, %v671
        %v680 = vpack.c.b16 %v672, %v672
        %v681 = vpack.c.b16 %v673, %v673
        %v682 = vpack.c.b16 %v674, %v674
        %v683 = vpack.c.b16 %v675, %v675
        %692 = vst [vmem:[%s284] sm:$0xf] %v676
        %693 = vst [vmem:[%s284 + $0xc] sm:$0xf] %v677
        %694 = vst [vmem:[%s284 + $0x18] sm:$0xf] %v678
        %695 = vst [vmem:[%s284 + $0x24] sm:$0xf] %v679
        %696 = vst [vmem:[%s284 + $0x30] sm:$0xf] %v680
        %697 = vst [vmem:[%s284 + $0x3c] sm:$0xf] %v681
        %698 = vst [vmem:[%s284 + $0x48] sm:$0xf] %v682
        %699 = vst [vmem:[%s284 + $0x54] sm:$0xf] %v683
        %v700 = vld [vmem:[#allocation5 + $0x4] sm:$0xf]
        %v701 = vld [vmem:[#allocation5 + $0x10] sm:$0xf]
        %v702 = vld [vmem:[#allocation5 + $0x1c] sm:$0xf]
        %v703 = vld [vmem:[#allocation5 + $0x28] sm:$0xf]
        %v704 = vld [vmem:[#allocation5 + $0x34] sm:$0xf]
        %v705 = vld [vmem:[#allocation5 + $0x40] sm:$0xf]
        %v706 = vld [vmem:[#allocation5 + $0x4c] sm:$0xf]
        %v707 = vld [vmem:[#allocation5 + $0x58] sm:$0xf]
        %v708 = vld [vmem:[#allocation5 + $0x64] sm:$0xf]
        %v709 = vld [vmem:[#allocation5 + $0x70] sm:$0xf]
        %v710 = vld [vmem:[#allocation5 + $0x7c] sm:$0xf]
        %v711 = vld [vmem:[#allocation5 + $0x88] sm:$0xf]
        %v712 = vld [vmem:[#allocation5 + $0x94] sm:$0xf]
        %v713 = vld [vmem:[#allocation5 + $0xa0] sm:$0xf]
        %v714 = vld [vmem:[#allocation5 + $0xac] sm:$0xf]
        %v715 = vld [vmem:[#allocation5 + $0xb8] sm:$0xf]
        %v716 = vld [vmem:[%s2 + $0x1] sm:$0x1]
        %v718 = vlaneseq
        %v719 = vshrl.u32 %v718, 7
        %v720 = vsub.s32 0, %v719
        %v721 = vrot.slane %v716, %v720
        %v739 = vunpack.c.l.b16 %v700
        %v740 = vunpack.c.l.b16 %v701
        %v741 = vunpack.c.l.b16 %v702
        %v742 = vunpack.c.l.b16 %v703
        %v743 = vunpack.c.l.b16 %v704
        %v744 = vunpack.c.l.b16 %v705
        %v745 = vunpack.c.l.b16 %v706
        %v746 = vunpack.c.l.b16 %v707
        %v747 = vunpack.c.l.b16 %v708
        %v748 = vunpack.c.l.b16 %v709
        %v749 = vunpack.c.l.b16 %v710
        %v750 = vunpack.c.l.b16 %v711
        %v751 = vunpack.c.l.b16 %v712
        %v752 = vunpack.c.l.b16 %v713
        %v753 = vunpack.c.l.b16 %v714
        %v754 = vunpack.c.l.b16 %v715
        %v755 = vpack.c.b16 %v740, %v739
        %v756 = vpack.c.b16 %v742, %v741
        %v757 = vpack.c.b16 %v744, %v743
        %v758 = vpack.c.b16 %v746, %v745
        %v759 = vpack.c.b16 %v748, %v747
        %v760 = vpack.c.b16 %v750, %v749
        %v761 = vpack.c.b16 %v752, %v751
        %v762 = vpack.c.b16 %v754, %v753
        %771 = vmatprep.subr.bf16.mxu0 0
        %772 = vmatpush1.bf16.msra.mxu0 %v755
        %773 = vmatprep.subr.bf16.mxu0 0
        %774 = vmatpush1.bf16.msra.mxu0 %v756
        %775 = vmatprep.subr.bf16.mxu0 0
        %776 = vmatpush1.bf16.msra.mxu0 %v757
        %777 = vmatprep.subr.bf16.mxu0 0
        %778 = vmatpush1.bf16.msra.mxu0 %v758
        %779 = vmatprep.subr.bf16.mxu0 0
        %780 = vmatpush1.bf16.msra.mxu0 %v759
        %781 = vmatprep.subr.bf16.mxu0 0
        %782 = vmatpush1.bf16.msra.mxu0 %v760
        %783 = vmatprep.subr.bf16.mxu0 0
        %784 = vmatpush1.bf16.msra.mxu0 %v761
        %785 = vmatprep.subr.bf16.mxu0 0
        %786 = vmatpush1.bf16.msra.mxu0 %v762
        %787 = vmatprep.subr.bf16.mxu0 0
        %788 = vmatpush1.bf16.msra.mxu0 0
        %789 = vmatprep.subr.bf16.mxu0 0
        %790 = vmatpush1.bf16.msra.mxu0 0
        %791 = vmatprep.subr.bf16.mxu0 0
        %792 = vmatpush1.bf16.msra.mxu0 0
        %793 = vmatprep.subr.bf16.mxu0 0
        %794 = vmatpush1.bf16.msra.mxu0 0
        %795 = vmatprep.subr.bf16.mxu0 0
        %796 = vmatpush1.bf16.msra.mxu0 0
        %797 = vmatprep.subr.bf16.mxu0 0
        %798 = vmatpush1.bf16.msra.mxu0 0
        %799 = vmatprep.subr.bf16.mxu0 0
        %800 = vmatpush1.bf16.msra.mxu0 0
        %801 = vmatprep.subr.bf16.mxu0 0
        %802 = vmatpush1.bf16.msra.mxu0 0
        %803 = vmatprep.mubr.bf16.mxu0 0
        %804 = vmatmul.mubr.bf16.gmra.mrb[0].mxu0 %v296
        %v805 = vpop.f32.mrb[0].mxu0
        %v806 = vadd.f32 %v721, %v805
        %v807 = vpop.f32.mrb[0].mxu0
        %v808 = vpop.f32.mrb[0].mxu0
        %v809 = vadd.f32 %v721, %v808
        %v810 = vpop.f32.mrb[0].mxu0
        %811 = vmatprep.mubr.bf16.mxu0 0
        %812 = vmatmul.mubr.bf16.gmra.mrb[0].mxu0 %v297
        %v813 = vpop.f32.mrb[0].mxu0
        %v814 = vadd.f32 %v721, %v813
        %v815 = vpop.f32.mrb[0].mxu0
        %v816 = vpop.f32.mrb[0].mxu0
        %v817 = vadd.f32 %v721, %v816
        %v818 = vpop.f32.mrb[0].mxu0
        %819 = vmatprep.mubr.bf16.mxu0 0
        %820 = vmatmul.mubr.bf16.gmra.mrb[0].mxu0 %v298
        %v821 = vpop.f32.mrb[0].mxu0
        %v822 = vadd.f32 %v721, %v821
        %v823 = vpop.f32.mrb[0].mxu0
        %v824 = vpop.f32.mrb[0].mxu0
        %v825 = vadd.f32 %v721, %v824
        %v826 = vpop.f32.mrb[0].mxu0
        %827 = vmatprep.mubr.bf16.mxu0 0
        %828 = vmatmul.mubr.bf16.gmra.mrb[0].mxu0 %v299
        %v829 = vpop.f32.mrb[0].mxu0
        %v830 = vadd.f32 %v721, %v829
        %v831 = vpop.f32.mrb[0].mxu0
        %v832 = vpop.f32.mrb[0].mxu0
        %v833 = vadd.f32 %v721, %v832
        %v834 = vpop.f32.mrb[0].mxu0
        %835 = vdwg.mxu0
        %v836 = vpack.c.bf16 %v809, %v806
        %v837 = vpack.c.bf16 %v817, %v814
        %v838 = vpack.c.bf16 %v825, %v822
        %v839 = vpack.c.bf16 %v833, %v830
        %v844 = vunpack.c.l.b16 %v836
        %v845 = vunpack.c.h.b16 %v836
        %v846 = vunpack.c.l.b16 %v837
        %v847 = vunpack.c.h.b16 %v837
        %v848 = vunpack.c.l.b16 %v838
        %v849 = vunpack.c.h.b16 %v838
        %v850 = vunpack.c.l.b16 %v839
        %v851 = vunpack.c.h.b16 %v839
        %v852 = vpack.c.b16 %v844, %v844
        %v853 = vpack.c.b16 %v845, %v845
        %v854 = vpack.c.b16 %v846, %v846
        %v855 = vpack.c.b16 %v847, %v847
        %v856 = vpack.c.b16 %v848, %v848
        %v857 = vpack.c.b16 %v849, %v849
        %v858 = vpack.c.b16 %v850, %v850
        %v859 = vpack.c.b16 %v851, %v851
        %868 = vst [vmem:[%s284 + $0x4] sm:$0xf] %v852
        %869 = vst [vmem:[%s284 + $0x10] sm:$0xf] %v853
        %870 = vst [vmem:[%s284 + $0x1c] sm:$0xf] %v854
        %871 = vst [vmem:[%s284 + $0x28] sm:$0xf] %v855
        %872 = vst [vmem:[%s284 + $0x34] sm:$0xf] %v856
        %873 = vst [vmem:[%s284 + $0x40] sm:$0xf] %v857
        %874 = vst [vmem:[%s284 + $0x4c] sm:$0xf] %v858
        %875 = vst [vmem:[%s284 + $0x58] sm:$0xf] %v859
        %v876 = vld [vmem:[#allocation5 + $0x8] sm:$0xf]
        %v877 = vld [vmem:[#allocation5 + $0x14] sm:$0xf]
        %v878 = vld [vmem:[#allocation5 + $0x20] sm:$0xf]
        %v879 = vld [vmem:[#allocation5 + $0x2c] sm:$0xf]
        %v880 = vld [vmem:[#allocation5 + $0x38] sm:$0xf]
        %v881 = vld [vmem:[#allocation5 + $0x44] sm:$0xf]
        %v882 = vld [vmem:[#allocation5 + $0x50] sm:$0xf]
        %v883 = vld [vmem:[#allocation5 + $0x5c] sm:$0xf]
        %v884 = vld [vmem:[#allocation5 + $0x68] sm:$0xf]
        %v885 = vld [vmem:[#allocation5 + $0x74] sm:$0xf]
        %v886 = vld [vmem:[#allocation5 + $0x80] sm:$0xf]
        %v887 = vld [vmem:[#allocation5 + $0x8c] sm:$0xf]
        %v888 = vld [vmem:[#allocation5 + $0x98] sm:$0xf]
        %v889 = vld [vmem:[#allocation5 + $0xa4] sm:$0xf]
        %v890 = vld [vmem:[#allocation5 + $0xb0] sm:$0xf]
        %v891 = vld [vmem:[#allocation5 + $0xbc] sm:$0xf]
        %v892 = vld [vmem:[%s2 + $0x2] sm:$0x1]
        %v894 = vlaneseq
        %v895 = vshrl.u32 %v894, 7
        %v896 = vsub.s32 0, %v895
        %v897 = vrot.slane %v892, %v896
        %v915 = vunpack.c.l.b16 %v876
        %v916 = vunpack.c.l.b16 %v877
        %v917 = vunpack.c.l.b16 %v878
        %v918 = vunpack.c.l.b16 %v879
        %v919 = vunpack.c.l.b16 %v880
        %v920 = vunpack.c.l.b16 %v881
        %v921 = vunpack.c.l.b16 %v882
        %v922 = vunpack.c.l.b16 %v883
        %v923 = vunpack.c.l.b16 %v884
        %v924 = vunpack.c.l.b16 %v885
        %v925 = vunpack.c.l.b16 %v886
        %v926 = vunpack.c.l.b16 %v887
        %v927 = vunpack.c.l.b16 %v888
        %v928 = vunpack.c.l.b16 %v889
        %v929 = vunpack.c.l.b16 %v890
        %v930 = vunpack.c.l.b16 %v891
        %v931 = vpack.c.b16 %v916, %v915
        %v932 = vpack.c.b16 %v918, %v917
        %v933 = vpack.c.b16 %v920, %v919
        %v934 = vpack.c.b16 %v922, %v921
        %v935 = vpack.c.b16 %v924, %v923
        %v936 = vpack.c.b16 %v926, %v925
        %v937 = vpack.c.b16 %v928, %v927
        %v938 = vpack.c.b16 %v930, %v929
        %947 = vmatprep.subr.bf16.mxu0 0
        %948 = vmatpush1.bf16.msra.mxu0 %v931
        %949 = vmatprep.subr.bf16.mxu0 0
        %950 = vmatpush1.bf16.msra.mxu0 %v932
        %951 = vmatprep.subr.bf16.mxu0 0
        %952 = vmatpush1.bf16.msra.mxu0 %v933
        %953 = vmatprep.subr.bf16.mxu0 0
        %954 = vmatpush1.bf16.msra.mxu0 %v934
        %955 = vmatprep.subr.bf16.mxu0 0
        %956 = vmatpush1.bf16.msra.mxu0 %v935
        %957 = vmatprep.subr.bf16.mxu0 0
        %958 = vmatpush1.bf16.msra.mxu0 %v936
        %959 = vmatprep.subr.bf16.mxu0 0
        %960 = vmatpush1.bf16.msra.mxu0 %v937
        %961 = vmatprep.subr.bf16.mxu0 0
        %962 = vmatpush1.bf16.msra.mxu0 %v938
        %963 = vmatprep.subr.bf16.mxu0 0
        %964 = vmatpush1.bf16.msra.mxu0 0
        %965 = vmatprep.subr.bf16.mxu0 0
        %966 = vmatpush1.bf16.msra.mxu0 0
        %967 = vmatprep.subr.bf16.mxu0 0
        %968 = vmatpush1.bf16.msra.mxu0 0
        %969 = vmatprep.subr.bf16.mxu0 0
        %970 = vmatpush1.bf16.msra.mxu0 0
        %971 = vmatprep.subr.bf16.mxu0 0
        %972 = vmatpush1.bf16.msra.mxu0 0
        %973 = vmatprep.subr.bf16.mxu0 0
        %974 = vmatpush1.bf16.msra.mxu0 0
        %975 = vmatprep.subr.bf16.mxu0 0
        %976 = vmatpush1.bf16.msra.mxu0 0
        %977 = vmatprep.subr.bf16.mxu0 0
        %978 = vmatpush1.bf16.msra.mxu0 0
        %979 = vmatprep.mubr.bf16.mxu0 0
        %980 = vmatmul.mubr.bf16.gmra.mrb[0].mxu0 %v296
        %v981 = vpop.f32.mrb[0].mxu0
        %v982 = vadd.f32 %v897, %v981
        %v983 = vpop.f32.mrb[0].mxu0
        %v984 = vpop.f32.mrb[0].mxu0
        %v985 = vadd.f32 %v897, %v984
        %v986 = vpop.f32.mrb[0].mxu0
        %987 = vmatprep.mubr.bf16.mxu0 0
        %988 = vmatmul.mubr.bf16.gmra.mrb[0].mxu0 %v297
        %v989 = vpop.f32.mrb[0].mxu0
        %v990 = vadd.f32 %v897, %v989
        %v991 = vpop.f32.mrb[0].mxu0
        %v992 = vpop.f32.mrb[0].mxu0
        %v993 = vadd.f32 %v897, %v992
        %v994 = vpop.f32.mrb[0].mxu0
        %995 = vmatprep.mubr.bf16.mxu0 0
        %996 = vmatmul.mubr.bf16.gmra.mrb[0].mxu0 %v298
        %v997 = vpop.f32.mrb[0].mxu0
        %v998 = vadd.f32 %v897, %v997
        %v999 = vpop.f32.mrb[0].mxu0
        %v1000 = vpop.f32.mrb[0].mxu0
        %v1001 = vadd.f32 %v897, %v1000
        %v1002 = vpop.f32.mrb[0].mxu0
        %1003 = vmatprep.mubr.bf16.mxu0 0
        %1004 = vmatmul.mubr.bf16.gmra.mrb[0].mxu0 %v299
        %v1005 = vpop.f32.mrb[0].mxu0
        %v1006 = vadd.f32 %v897, %v1005
        %v1007 = vpop.f32.mrb[0].mxu0
        %v1008 = vpop.f32.mrb[0].mxu0
        %v1009 = vadd.f32 %v897, %v1008
        %v1010 = vpop.f32.mrb[0].mxu0
        %1011 = vdwg.mxu0
        %v1012 = vld [vmem:[%s5] sm:$0x3]
        %1017 = vrot.lane.b32.xlu0 %v429, 124
        %v1018 = vpop.permute.xlu0 %1017
        %1019 = vrot.lane.b32.xlu0 %v430, 124
        %v1020 = vpop.permute.xlu0 %1019
        %1021 = vrot.lane.b32.xlu0 %v431, 124
        %v1022 = vpop.permute.xlu0 %1021
        %1023 = vrot.lane.b32.xlu0 %v432, 124
        %v1024 = vpop.permute.xlu0 %1023
        %v1026 = vsel %vm570, %v1018, 0
        %v1029 = vsel %vm570, %v1020, 0
        %v1032 = vsel %vm570, %v1022, 0
        %v1035 = vsel %vm570, %v1024, 0
        %v1038 = vsel %vm583, %v1012, 0
        %1040 = vmatprep.subr.bf16.mxu0 0
        %1041 = vmatpush1.bf16.msra.mxu0 %v1038
        %1042 = vmatprep.subr.bf16.mxu0 0
        %1043 = vmatpush1.bf16.msra.mxu0 0
        %1044 = vmatprep.subr.bf16.mxu0 0
        %1045 = vmatpush1.bf16.msra.mxu0 0
        %1046 = vmatprep.subr.bf16.mxu0 0
        %1047 = vmatpush1.bf16.msra.mxu0 0
        %1048 = vmatprep.subr.bf16.mxu0 0
        %1049 = vmatpush1.bf16.msra.mxu0 0
        %1050 = vmatprep.subr.bf16.mxu0 0
        %1051 = vmatpush1.bf16.msra.mxu0 0
        %1052 = vmatprep.subr.bf16.mxu0 0
        %1053 = vmatpush1.bf16.msra.mxu0 0
        %1054 = vmatprep.subr.bf16.mxu0 0
        %1055 = vmatpush1.bf16.msra.mxu0 0
        %1056 = vmatprep.subr.bf16.mxu0 0
        %1057 = vmatpush1.bf16.msra.mxu0 0
        %1058 = vmatprep.subr.bf16.mxu0 0
        %1059 = vmatpush1.bf16.msra.mxu0 0
        %1060 = vmatprep.subr.bf16.mxu0 0
        %1061 = vmatpush1.bf16.msra.mxu0 0
        %1062 = vmatprep.subr.bf16.mxu0 0
        %1063 = vmatpush1.bf16.msra.mxu0 0
        %1064 = vmatprep.subr.bf16.mxu0 0
        %1065 = vmatpush1.bf16.msra.mxu0 0
        %1066 = vmatprep.subr.bf16.mxu0 0
        %1067 = vmatpush1.bf16.msra.mxu0 0
        %1068 = vmatprep.subr.bf16.mxu0 0
        %1069 = vmatpush1.bf16.msra.mxu0 0
        %1070 = vmatprep.subr.bf16.mxu0 0
        %1071 = vmatpush1.bf16.msra.mxu0 0
        %1072 = vmatprep.mubr.bf16.mxu0 0
        %1073 = vmatmul.mubr.bf16.gmra.mrb[0].mxu0 %v1026
        %v1074 = vpop.f32.mrb[0].mxu0
        %v1075 = vadd.f32 0.0, %v1074
        %v1076 = vpop.f32.mrb[0].mxu0
        %v1077 = vpop.f32.mrb[0].mxu0
        %v1078 = vadd.f32 0.0, %v1077
        %v1079 = vpop.f32.mrb[0].mxu0
        %1080 = vmatprep.mubr.bf16.mxu0 0
        %1081 = vmatmul.mubr.bf16.gmra.mrb[0].mxu0 %v1029
        %v1082 = vpop.f32.mrb[0].mxu0
        %v1083 = vadd.f32 0.0, %v1082
        %v1084 = vpop.f32.mrb[0].mxu0
        %v1085 = vpop.f32.mrb[0].mxu0
        %v1086 = vadd.f32 0.0, %v1085
        %v1087 = vpop.f32.mrb[0].mxu0
        %1088 = vmatprep.mubr.bf16.mxu0 0
        %1089 = vmatmul.mubr.bf16.gmra.mrb[0].mxu0 %v1032
        %v1090 = vpop.f32.mrb[0].mxu0
        %v1091 = vadd.f32 0.0, %v1090
        %v1092 = vpop.f32.mrb[0].mxu0
        %v1093 = vpop.f32.mrb[0].mxu0
        %v1094 = vadd.f32 0.0, %v1093
        %v1095 = vpop.f32.mrb[0].mxu0
        %1096 = vmatprep.mubr.bf16.mxu0 0
        %1097 = vmatmul.mubr.bf16.gmra.mrb[0].mxu0 %v1035
        %v1098 = vpop.f32.mrb[0].mxu0
        %v1099 = vadd.f32 0.0, %v1098
        %v1100 = vpop.f32.mrb[0].mxu0
        %v1101 = vpop.f32.mrb[0].mxu0
        %v1102 = vadd.f32 0.0, %v1101
        %v1103 = vpop.f32.mrb[0].mxu0
        %1104 = vdwg.mxu0
        %v1105 = vadd.f32 %v982, %v1075
        %v1106 = vadd.f32 %v985, %v1078
        %v1107 = vadd.f32 %v990, %v1083
        %v1108 = vadd.f32 %v993, %v1086
        %v1109 = vadd.f32 %v998, %v1091
        %v1110 = vadd.f32 %v1001, %v1094
        %v1111 = vadd.f32 %v1006, %v1099
        %v1112 = vadd.f32 %v1009, %v1102
        %v1113 = vpack.c.bf16 %v1106, %v1105
        %v1114 = vpack.c.bf16 %v1108, %v1107
        %v1115 = vpack.c.bf16 %v1110, %v1109
        %v1116 = vpack.c.bf16 %v1112, %v1111
        %v1121 = vunpack.c.l.b16 %v1113
        %v1122 = vunpack.c.h.b16 %v1113
        %v1123 = vunpack.c.l.b16 %v1114
        %v1124 = vunpack.c.h.b16 %v1114
        %v1125 = vunpack.c.l.b16 %v1115
        %v1126 = vunpack.c.h.b16 %v1115
        %v1127 = vunpack.c.l.b16 %v1116
        %v1128 = vunpack.c.h.b16 %v1116
        %v1129 = vpack.c.b16 %v1121, %v1121
        %v1130 = vpack.c.b16 %v1122, %v1122
        %v1131 = vpack.c.b16 %v1123, %v1123
        %v1132 = vpack.c.b16 %v1124, %v1124
        %v1133 = vpack.c.b16 %v1125, %v1125
        %v1134 = vpack.c.b16 %v1126, %v1126
        %v1135 = vpack.c.b16 %v1127, %v1127
        %v1136 = vpack.c.b16 %v1128, %v1128
        %1145 = vst [vmem:[%s284 + $0x8] sm:$0xf] %v1129
        %1146 = vst [vmem:[%s284 + $0x14] sm:$0xf] %v1130
        %1147 = vst [vmem:[%s284 + $0x20] sm:$0xf] %v1131
        %1148 = vst [vmem:[%s284 + $0x2c] sm:$0xf] %v1132
        %1149 = vst [vmem:[%s284 + $0x38] sm:$0xf] %v1133
        %1150 = vst [vmem:[%s284 + $0x44] sm:$0xf] %v1134
        %1151 = vst [vmem:[%s284 + $0x50] sm:$0xf] %v1135
        %1152 = vst [vmem:[%s284 + $0x5c] sm:$0xf] %v1136
        %s1153 = sand.u32 %s163, 1
        %s1154 = scalar_lea.sflag [#allocation4], %s1153
        %s1155 = sand.u32 %s163, 1
        %s1156 = smul.addr %s1155, 96
        %s1157 = scalar_lea.vmem [#allocation7], %s1156
        // Predicated region
        $region53: #{tpu_custom_call.1} parent=43 // pred_check
          %p1158 = pneg %p173
        $region54: #{tpu_custom_call.1} parent=43 // pred_check_branch
          %1160 = sbr.rel (%p1158) target = $region56
        $region55: #{tpu_custom_call.1} parent=43 // pred_region
          %s1161 = smul.u32 8, %s24
          %s1163 = ssub.s32 1536, 1536
          %1164 = vsyncadd %s1154, %s1163
          %s1165 = smul.addr %s1161, 3
          %s1166 = smul.addr %s1165, 64
          %s1167 = scalar_lea.hbm %s6, %s1166
          %s1168 = sshll.u32 %s1157, 4
          %s1169 = int_to_ptr.vmem [resolvable:$true] %s1168
          %1174 = dma.vmem_to_hbm [thread:$0]  %s1169, 1536, %s1167, %s1154, 192, 192, 12
        $region56: #{tpu_custom_call.1} parent=43 // pred_fallthru
          _
      $region44: #{tpu_custom_call.1} parent=5 // pred_fallthru
        _
      %p1175 = scmp.le.s32.totalorder 2, %s19
      // Predicated region
      $region57: #{tpu_custom_call.1} parent=5 // pred_check
        %p1176 = pneg %p1175
      $region58: #{tpu_custom_call.1} parent=5 // pred_check_branch
        %1178 = sbr.rel (%p1176) target = $region60
      $region59: #{tpu_custom_call.1} parent=5 // pred_region
        %s1179 = ssub.s32 %s19, 2
        // Predicated region
        $region61: #{tpu_custom_call.1} parent=59 // pred_check
          %p1180 = pneg %p179
        $region62: #{tpu_custom_call.1} parent=59 // pred_check_branch
          %1182 = sbr.rel (%p1180) target = $region64
        $region63: #{tpu_custom_call.1} parent=59 // pred_region
          %s1183 = sand.u32 %s164, 1
          %s1184 = scalar_lea.sflag [#allocation4], %s1183
          %s1185 = sand.u32 %s164, 1
          %s1186 = smul.addr %s1185, 96
          %s1187 = scalar_lea.vmem [#allocation7], %s1186
          %1188 = dma.done %s1184, 1536
        $region64: #{tpu_custom_call.1} parent=59 // pred_fallthru
          _
      $region60: #{tpu_custom_call.1} parent=5 // pred_fallthru
        _
    $region6: #{tpu_custom_call.1} parent=1 // loop_footer
      %s23 = sadd.s32 1, %s19
    $region7: #{tpu_custom_call.1} parent=1 // loop_footer_branch
      %18 = sbr.rel target = $region3
    $region8: #{tpu_custom_call.1} parent=1 // loop_exit
      _
    %1189 = vsyncpa [#allocation3], 1
    %s1190 = scalar_lea.sflag [#allocation3], 1
    %1191 = vsyncpa %s1190, 1
    %1192 = vsyncpa [#allocation6], 1
    %1193 = vsyncpa [#allocation4], 1
    %s1194 = scalar_lea.sflag [#allocation4], 1
    %1195 = vsyncpa %s1194, 1

</llo_original>
